<compile_context>
chip_gen: v6e
topology: v6e:2x2x1
jax: 0.10.0
libtpu: 0.0.40
codegen_flags: <defaults>
</compile_context>

<pallas_src>
import jax
import jax.numpy as jnp
from jax.experimental import pallas as pl
from jax.experimental.pallas import tpu as pltpu


def _embedding_kernel(x_ref, wt_ref, o_ref):
    # x_ref: (tm, K), wt_ref: (K, E), o_ref: (tm, E)
    x = x_ref[...]
    wt = wt_ref[...]
    K = x.shape[1]
    if K <= 8:
        # Tiny contraction: two (or K) VPU FMAs instead of a K=2 MXU dot that would
        # use 2/256 contraction rows and be pure pipeline-fill latency.
        acc = x[:, 0:1].astype(jnp.float32) * wt[0:1, :].astype(jnp.float32)
        for k in range(1, K):
            acc = acc + x[:, k:k + 1].astype(jnp.float32) * wt[k:k + 1, :].astype(jnp.float32)
    else:
        acc = jnp.dot(x, wt, preferred_element_type=jnp.float32)
    o_ref[...] = acc.astype(o_ref.dtype)


def _round_up(v, m):
    return ((v + m - 1) // m) * m


def embedding_net(x, weight, *, tm_target=4096, single_tile_max=1024):
    """Pallas equivalent of nn.Linear(node_dim, embedding_dim, bias=False).

    x:      (B, N, node_dim)
    weight: (embedding_dim, node_dim)   -- torch nn.Linear layout
    returns (B, N, embedding_dim)
    """
    B, N, node_dim = x.shape
    E, node_dim_w = weight.shape
    assert node_dim_w == node_dim

    M = B * N
    x2 = x.reshape(M, node_dim)
    # (node_dim, E): a 4 KiB lane-dense tile, resident in VMEM via constant index_map.
    wt = jnp.transpose(weight)

    if M <= single_tile_max:
        # Small / latency-bound case: single grid step; block == full array, so no
        # (8,128) divisibility constraint applies.
        tm = M
    else:
        # HBM-write-bound case: large row tiles, >=2 grid steps (v7x dual-TC sharding),
        # tm multiple of 8 so the ragged last block satisfies the sublane constraint.
        tm = min(tm_target, _round_up(pl.cdiv(M, 2), 8))
    grid_m = pl.cdiv(M, tm)

    itemsize = jnp.dtype(x.dtype).itemsize
    cost = pl.CostEstimate(
        flops=2 * M * node_dim * E,
        transcendentals=0,
        bytes_accessed=M * node_dim * itemsize + M * E * itemsize + node_dim * E * itemsize,
    )

    out = pl.pallas_call(
        _embedding_kernel,
        out_shape=jax.ShapeDtypeStruct((M, E), x.dtype),
        grid=(grid_m,),
        in_specs=[
            pl.BlockSpec((tm, node_dim), lambda i: (i, 0)),   # row tile of activations
            pl.BlockSpec((node_dim, E), lambda i: (0, 0)),    # weight, resident across steps
        ],
        out_specs=pl.BlockSpec((tm, E), lambda i: (i, 0)),
        compiler_params=pltpu.CompilerParams(
            dimension_semantics=("parallel",),
        ),
        cost_estimate=cost,
    )(x2, wt)

    return out.reshape(B, N, E)


def reference(x, weight):
    # pure-JAX reference mirroring nn.Linear(node_dim, embedding_dim, bias=False)
    return jnp.einsum("bnd,ed->bne", x, weight)


if __name__ == "__main__":
    key = jax.random.PRNGKey(0)
    k_x, k_w, k_x2 = jax.random.split(key, 3)

    # shapes implied by the graph-layers usage: 2-D node coordinates -> embedding
    B, N = 2, 8
    node_dim = 2
    embedding_dim = 128

    x = jax.random.normal(k_x, (B, N, node_dim), jnp.float32)
    # torch nn.Linear weight layout: (out_features, in_features)
    weight = jax.random.uniform(
        k_w, (embedding_dim, node_dim), jnp.float32, minval=-0.5, maxval=0.5
    )

    out = jax.block_until_ready(embedding_net(x, weight))
    ref = reference(x, weight)
    assert out.shape == (B, N, embedding_dim)
    assert jnp.allclose(out, ref, atol=1e-5, rtol=1e-5), "mismatch vs JAX reference (small)"

    # Also exercise the tiled, ragged-grid path (>=2 grid steps, no padding).
    B2, N2 = 3, 700   # M = 2100 -> two ragged row tiles of 1056
    x_big = jax.random.normal(k_x2, (B2, N2, node_dim), jnp.float32)
    out_big = jax.block_until_ready(embedding_net(x_big, weight))
    ref_big = reference(x_big, weight)
    assert out_big.shape == (B2, N2, embedding_dim)
    assert jnp.allclose(out_big, ref_big, atol=1e-5, rtol=1e-5), "mismatch vs JAX reference (tiled)"

    print("KERNEL_OK")
</pallas_src>

<mosaic_0001>
module attributes {stable_mosaic.version = 11 : i64} {
  func.func @_embedding_kernel(%arg0: i32, %arg1: memref<16x2xf32, #tpu.memory_space<vmem>>, %arg2: memref<2x128xf32, #tpu.memory_space<vmem>>, %arg3: memref<16x128xf32, #tpu.memory_space<vmem>>) attributes {dimension_semantics = [#tpu.dimension_semantics<parallel>], iteration_bounds = array<i64: 1>, scalar_prefetch = 0 : i64, scratch_operands = 0 : i64, tpu.core_type = #tpu.core_type<tc>, window_params = [{transform_indices = @transform_0, window_bounds = array<i64: 16, 2>}, {pipeline_mode = #tpu.pipeline_mode<synchronous>, transform_indices = @transform_1, window_bounds = array<i64: 2, 128>}, {transform_indices = @transform_2, window_bounds = array<i64: 16, 128>}]} {
    %c0 = arith.constant 0 : index
    %c0_0 = arith.constant 0 : index
    %0 = vector.load %arg1[%c0, %c0_0] : memref<16x2xf32, #tpu.memory_space<vmem>>, vector<16x2xf32>
    %c0_1 = arith.constant 0 : index
    %c0_2 = arith.constant 0 : index
    %1 = vector.load %arg2[%c0_1, %c0_2] : memref<2x128xf32, #tpu.memory_space<vmem>>, vector<2x128xf32>
    %2 = vector.extract_strided_slice %0 {offsets = [0, 0], sizes = [16, 1], strides = [1, 1]} : vector<16x2xf32> to vector<16x1xf32>
    %3 = vector.extract_strided_slice %1 {offsets = [0, 0], sizes = [1, 128], strides = [1, 1]} : vector<2x128xf32> to vector<1x128xf32>
    %4 = vector.broadcast %2 : vector<16x1xf32> to vector<16x128xf32>
    %5 = vector.broadcast %3 : vector<1x128xf32> to vector<16x128xf32>
    %6 = arith.mulf %4, %5 : vector<16x128xf32>
    %7 = vector.extract_strided_slice %0 {offsets = [0, 1], sizes = [16, 1], strides = [1, 1]} : vector<16x2xf32> to vector<16x1xf32>
    %8 = vector.extract_strided_slice %1 {offsets = [1, 0], sizes = [1, 128], strides = [1, 1]} : vector<2x128xf32> to vector<1x128xf32>
    %9 = vector.broadcast %7 : vector<16x1xf32> to vector<16x128xf32>
    %10 = vector.broadcast %8 : vector<1x128xf32> to vector<16x128xf32>
    %11 = arith.mulf %9, %10 : vector<16x128xf32>
    %12 = arith.addf %6, %11 : vector<16x128xf32>
    %c0_3 = arith.constant 0 : index
    %c0_4 = arith.constant 0 : index
    %13 = vector.load %arg3[%c0_3, %c0_4] : memref<16x128xf32, #tpu.memory_space<vmem>>, vector<16x128xf32>
    tpu.vector_store %arg3[%c0_3, %c0_4], %12 {strides = array<i32>} : memref<16x128xf32, #tpu.memory_space<vmem>>, vector<16x128xf32>,
    return
  }
  func.func @transform_0(%arg0: i32) -> (i32, i32) {
    %c0_i32 = arith.constant 0 : i32
    %c0_i32_0 = arith.constant 0 : i32
    return %arg0, %c0_i32 : i32, i32
  }
  func.func @transform_1(%arg0: i32) -> (i32, i32) {
    %c0_i32 = arith.constant 0 : i32
    %c0_i32_0 = arith.constant 0 : i32
    %c0_i32_1 = arith.constant 0 : i32
    return %c0_i32, %c0_i32_0 : i32, i32
  }
  func.func @transform_2(%arg0: i32) -> (i32, i32) {
    %c0_i32 = arith.constant 0 : i32
    %c0_i32_0 = arith.constant 0 : i32
    return %arg0, %c0_i32 : i32, i32
  }
}

</mosaic_0001>

<llo_original>
// kernel: tpu_custom_call.1
$region0: #{tpu_custom_call.1}
  #allocation0 [shape = 'u32[]', space=smem, size = 0x4, offset = 0x4, fixed_abs, tag = 'smem constant byte address 0x4 - core index']
  #allocation1 [shape = 'u32[144,128]{1,0:T(1,128)}', space=vmem, size = 0x12000, scoped, tag = 'internal scratch']
  %s0 = inlined_call_operand.vmem [shape: f32[16,2], index: 0, kind: input, shape index: {}]
  %s1 = inlined_call_operand.vmem [shape: f32[2,128], index: 1, kind: input, shape index: {}]
  %s2 = inlined_call_operand.hbm [shape: f32[16,128], index: 2, kind: output, shape index: {}]
  %s3 = sld [smem:[#allocation0]]
  $region18: #{tpu_custom_call.1} parent=0
    _
  %s5 = ssub.s32 1, %s3
  %s6 = scalar_select 0, %s5, %s3
  $region1: #{tpu_custom_call.1} parent=0
    #allocation2 [shape = 'u8[8192]{0}', space=vmem, size = 0x2000, scoped, tag = 'output window, operand 0, single buffered']
    #allocation3 [shape = 's32[1]{0}', space=sflag, size = 0x4, scoped, tag = 'scoped memory for tpu_custom_call.1']
    %7 = vsyncpa [#allocation3], 0
    // Predicated region
    $region2: #{tpu_custom_call.1} parent=1 // pred_check
      _
    $region3: #{tpu_custom_call.1} parent=1 // pred_check_branch
      %9 = sbr.rel (0) target = $region5
    $region4: #{tpu_custom_call.1} parent=1 // pred_region
      _
    $region5: #{tpu_custom_call.1} parent=1 // pred_fallthru
      _
    // Predicated region
    $region6: #{tpu_custom_call.1} parent=1 // pred_check
      _
    $region7: #{tpu_custom_call.1} parent=1 // pred_check_branch
      %11 = sbr.rel (0) target = $region9
    $region8: #{tpu_custom_call.1} parent=1 // pred_region
      _
    $region9: #{tpu_custom_call.1} parent=1 // pred_fallthru
      _
    %v12 = vld [vmem:[%s0] sm:$0xff]
    %v13 = vld [vmem:[%s0 + $0x8] sm:$0xff]
    %v14 = vld [vmem:[%s1] sm:$0x3]
    %16 = vset.pattern.permute.xlu0 0
    %17 = vperm.xlu0 %16, %v12
    %v18 = vpop.permute.xlu0 %17
    %21 = vset.pattern.permute.xlu0 0
    %22 = vperm.xlu0 %21, %v13
    %v23 = vpop.permute.xlu0 %22
    %v25 = vlaneseq
    %v26 = vshrl.u32 %v25, 7
    %v27 = vsub.s32 0, %v26
    %v28 = vrot.slane %v14, %v27
    %v29 = vmul.f32 %v18, %v28
    %v30 = vmul.f32 %v23, %v28
    %31 = vset.pattern.permute.xlu0 1
    %32 = vperm.xlu0 %31, %v12
    %v33 = vpop.permute.xlu0 %32
    %35 = vset.pattern.permute.xlu0 1
    %36 = vperm.xlu0 %35, %v13
    %v37 = vpop.permute.xlu0 %36
    %v39 = vlaneseq
    %v40 = vshrl.u32 %v39, 7
    %v41 = vsub.s32 1, %v40
    %v42 = vrot.slane %v14, %v41
    %v43 = vmul.f32 %v33, %v42
    %v44 = vmul.f32 %v37, %v42
    %v45 = vadd.f32 %v29, %v43
    %v46 = vadd.f32 %v30, %v44
    %47 = vst [vmem:[#allocation2] sm:$0xff] %v45
    %48 = vst [vmem:[#allocation2 + $0x8] sm:$0xff] %v46
    // Predicated region
    $region10: #{tpu_custom_call.1} parent=1 // pred_check
      _
    $region11: #{tpu_custom_call.1} parent=1 // pred_check_branch
      %50 = sbr.rel (0) target = $region13
    $region12: #{tpu_custom_call.1} parent=1 // pred_region
      %s52 = ssub.s32 256, 256
      %53 = vsyncadd [#allocation3], %s52
      %s54 = sshll.u32 [#allocation2], 4
      %s55 = int_to_ptr.vmem [resolvable:$true] %s54
      %60 = dma.vmem_to_hbm [thread:$0]  %s55, 256, %s2, [#allocation3], 128, 128, 8
    $region13: #{tpu_custom_call.1} parent=1 // pred_fallthru
      _
    // Predicated region
    $region14: #{tpu_custom_call.1} parent=1 // pred_check
      _
    $region15: #{tpu_custom_call.1} parent=1 // pred_check_branch
      %62 = sbr.rel (0) target = $region17
    $region16: #{tpu_custom_call.1} parent=1 // pred_region
      %63 = dma.done [#allocation3], 256
    $region17: #{tpu_custom_call.1} parent=1 // pred_fallthru
      _
    %64 = vsyncpa [#allocation3], 1

</llo_original>
